<compile_context>
chip_gen: v7x
topology: tpu7x:2x2x1
jax: 0.10.0
libtpu: 0.0.40
codegen_flags: <defaults>
</compile_context>

<pallas_src>
import math
from functools import partial

import jax
import jax.numpy as jnp
from jax.experimental import pallas as pl
from jax.experimental.pallas import tpu as pltpu


def _gelu_exact(x):
    # nn.GELU default = exact (erf-based) GELU, computed in f32.
    # TODO(synk): switch to tanh-approx GELU (EUP slot) if the model tolerates
    # the numerics change -- erf is a long VPU polynomial.
    return 0.5 * x * (1.0 + jax.lax.erf(x * (1.0 / math.sqrt(2.0))))


def difference_module_kernel(q_ref, k_ref, v_ref,
                             wp_ref, w1_ref, w2_ref,
                             vec_ref,
                             o_ref, *, scale, eps, D, H):
    BB, N, _ = q_ref.shape          # batch block, tokens, channels

    # Packed small vectors: rows = [bp, gamma, beta, b2, b1] (f32, padded lanes).
    bp = vec_ref[0:1, :D]
    gamma = vec_ref[1:2, :D]
    beta = vec_ref[2:3, :D]
    b2 = vec_ref[3:4, :D]
    b1 = vec_ref[4:5, :H]

    # f32 copies for VPU math / residuals, bf16 copies for MXU operands.
    q_f32 = q_ref[...].astype(jnp.float32)                  # (BB, N, D)
    v_f32 = v_ref[...].astype(jnp.float32)                  # (BB, N, D)
    # Fold the softmax scale into q in f32 (O(BB*N*D)), then cast for the MXU.
    q_bf = (q_f32 * scale).astype(jnp.bfloat16)
    k_bf = k_ref[...]                                        # already bf16
    v_bf = v_ref[...].astype(jnp.bfloat16)

    # attn = softmax(q*scale @ k^T) over the last dim (batched, bf16 -> f32 acc).
    s = jnp.einsum('bqd,bkd->bqk', q_bf, k_bf,
                   preferred_element_type=jnp.float32)       # (BB, N, N)
    m = jnp.max(s, axis=-1, keepdims=True)
    p = jnp.exp(s - m)
    attn = p / jnp.sum(p, axis=-1, keepdims=True)            # exact normalize
    # attn_drop is Dropout(0.0) -> identity (eval semantics)

    # v' = dif_proj(v - attn @ v)
    av = jnp.einsum('bqk,bkd->bqd', attn.astype(jnp.bfloat16), v_bf,
                    preferred_element_type=jnp.float32)      # (BB, N, D)
    d = v_f32 - av

    # Flatten the batch block for the three Linears: (BB*N, D) matmuls keep the
    # MXU M-dimension as tall as possible; the reshape is sublane-only.
    d2 = d.reshape(BB * N, D)
    d2 = jnp.dot(d2.astype(jnp.bfloat16), wp_ref[...],
                 preferred_element_type=jnp.float32) + bp

    # q = q + v'   (residual, f32)
    q1 = q_f32.reshape(BB * N, D) + d2

    # LayerNorm(dim) over channels, via E[x] / E[x^2] (f32 on the VPU/EUP).
    mu = jnp.mean(q1, axis=-1, keepdims=True)
    ex2 = jnp.mean(q1 * q1, axis=-1, keepdims=True)
    var = ex2 - mu * mu
    xn = (q1 - mu) * jax.lax.rsqrt(var + eps)
    xn = xn * gamma + beta

    # Mlp: Linear(D, H) -> GELU -> Linear(H, D)  (drop=0.0 -> identity)
    h = jnp.dot(xn.astype(jnp.bfloat16), w1_ref[...],
                preferred_element_type=jnp.float32) + b1
    h = _gelu_exact(h)
    out = jnp.dot(h.astype(jnp.bfloat16), w2_ref[...],
                  preferred_element_type=jnp.float32) + b2

    # q = mlp(norm(q)) + q   (second residual)
    o_ref[...] = (out + q1).reshape(BB, N, D).astype(o_ref.dtype)


def _pick_block_b(B, N):
    # Single grid step by default (the grid is a sequential loop on v5e/v6e's
    # one TensorCore; ~0.35 us fixed cost per step).  Split into 2 "parallel"
    # steps (feeds v7x's 2 TCs) only when each slab keeps the MXU busy:
    # >= 256 flattened rows per step.
    if B % 2 == 0 and (B // 2) * N >= 256:
        return B // 2
    return B


def difference_module(q, k, v, params, *, eps=1e-5, block_b=None):
    B, N, D = q.shape
    H = params["w1_t"].shape[1]
    scale = float(D) ** (-0.5)   # head_dim = dim in this module (single head)

    if block_b is None:
        block_b = _pick_block_b(B, N)
    assert B % block_b == 0, "batch must be divisible by block_b"
    nb = B // block_b

    kernel = partial(difference_module_kernel, scale=scale, eps=eps, D=D, H=H)

    # MXU operands shipped in bf16 (half the DMA bytes): weights and k.
    wp_bf = params["wp_t"].astype(jnp.bfloat16)
    w1_bf = params["w1_t"].astype(jnp.bfloat16)
    w2_bf = params["w2_t"].astype(jnp.bfloat16)
    k_bf = k.astype(jnp.bfloat16)

    # Pack the small f32 vectors into one (5, max(D, H)) operand.
    max_k = max(D, H)
    vec = jnp.zeros((5, max_k), jnp.float32)
    vec = vec.at[0, :D].set(params["bp"][0])
    vec = vec.at[1, :D].set(params["gamma"][0])
    vec = vec.at[2, :D].set(params["beta"][0])
    vec = vec.at[3, :D].set(params["b2"][0])
    vec = vec.at[4, :H].set(params["b1"][0])

    tok_spec = pl.BlockSpec((block_b, N, D), lambda b: (b, 0, 0))
    full2d = lambda shape: pl.BlockSpec(shape, lambda b: (0, 0))

    # Advisory cost estimate (matmuls + transcendentals + HBM traffic).
    flops = (4 * B * N * N * D          # scores + attn @ v
             + 2 * B * N * D * D        # dif_proj
             + 4 * B * N * D * H        # fc1 + fc2
             + 12 * B * N * D)          # elementwise (approx)
    transcendentals = B * N * N + B * N * H + 2 * B * N   # exp, erf, rsqrt
    bytes_accessed = (4 * 3 * B * N * D + 2 * B * N * D   # q,v,out f32 + k bf16
                      + 2 * (D * D + 2 * D * H)           # bf16 weights
                      + 4 * 5 * max_k)                    # packed vectors

    # VMEM working-set estimate; only raise the scoped limit if we would exceed
    # v5e's 16 MiB default (cap at 64 MiB = v7x physical VMEM).
    tok = block_b * N * D
    vmem_est = (2 * tok * (4 + 2 + 4)              # q(f32)+k(bf16)+v(f32), dbl-buffered
                + 2 * tok * 4                      # output (f32), dbl-buffered
                + 2 * (D * D + 2 * D * H)          # bf16 weights
                + 4 * 5 * max_k                    # packed vectors
                + 4 * (3 * block_b * N * N         # score/softmax f32 temps
                       + 2 * block_b * N * H       # mlp hidden temps
                       + 6 * block_b * N * D))     # f32 token temps
    vmem_limit = None
    if vmem_est > (16 << 20):
        vmem_limit = int(min(2 * vmem_est, 64 << 20))

    return pl.pallas_call(
        kernel,
        out_shape=jax.ShapeDtypeStruct((B, N, D), q.dtype),
        grid=(nb,),
        in_specs=[
            tok_spec, tok_spec, tok_spec,                  # q (f32), k (bf16), v (f32)
            full2d((D, D)),                                # dif_proj W^T (bf16)
            full2d((D, H)),                                # mlp fc1 W^T (bf16)
            full2d((H, D)),                                # mlp fc2 W^T (bf16)
            full2d((5, max_k)),                            # packed [bp,gamma,beta,b2,b1]
        ],
        out_specs=tok_spec,
        compiler_params=pltpu.CompilerParams(
            dimension_semantics=("parallel",),
            vmem_limit_bytes=vmem_limit),
        cost_estimate=pl.CostEstimate(
            flops=flops, transcendentals=transcendentals,
            bytes_accessed=bytes_accessed),
    )(q, k_bf, v, wp_bf, w1_bf, w2_bf, vec)


# ---------------------------------------------------------------------------
# References (plain JAX) for validation.
# ---------------------------------------------------------------------------

def _reference_f32(q, k, v, params, eps=1e-5):
    """Pure f32 reference (matches the PyTorch module exactly)."""
    D = q.shape[-1]
    scale = float(D) ** (-0.5)
    attn = jax.nn.softmax((q @ jnp.swapaxes(k, -2, -1)) * scale, axis=-1)
    d = v - attn @ v
    d = d @ params["wp_t"] + params["bp"][0]
    q1 = q + d
    mu = jnp.mean(q1, axis=-1, keepdims=True)
    var = jnp.mean((q1 - mu) ** 2, axis=-1, keepdims=True)
    xn = (q1 - mu) / jnp.sqrt(var + eps) * params["gamma"][0] + params["beta"][0]
    h = jax.nn.gelu(xn @ params["w1_t"] + params["b1"][0], approximate=False)
    out = h @ params["w2_t"] + params["b2"][0]
    return out + q1


def _reference_bf16_matmul(q, k, v, params, eps=1e-5):
    """Reference mirroring the kernel's numerics: bf16 MXU operands, f32 acc,
    pre-scaled q, exact softmax divide, E[x^2]-based LayerNorm."""
    bf = jnp.bfloat16
    D = q.shape[-1]
    scale = float(D) ** (-0.5)
    qf = q.astype(jnp.float32)
    vf = v.astype(jnp.float32)
    q_bf = (qf * scale).astype(bf)
    s = jnp.einsum('bqd,bkd->bqk', q_bf, k.astype(bf),
                   preferred_element_type=jnp.float32)
    m = jnp.max(s, axis=-1, keepdims=True)
    p = jnp.exp(s - m)
    attn = p / jnp.sum(p, axis=-1, keepdims=True)
    av = jnp.einsum('bqk,bkd->bqd', attn.astype(bf), v.astype(bf),
                    preferred_element_type=jnp.float32)
    d = vf - av
    d = jnp.einsum('bnd,de->bne', d.astype(bf), params["wp_t"].astype(bf),
                   preferred_element_type=jnp.float32) + params["bp"][0]
    q1 = qf + d
    mu = jnp.mean(q1, axis=-1, keepdims=True)
    var = jnp.mean(q1 * q1, axis=-1, keepdims=True) - mu * mu
    xn = (q1 - mu) * jax.lax.rsqrt(var + eps) * params["gamma"][0] + params["beta"][0]
    h = jnp.einsum('bnd,dh->bnh', xn.astype(bf), params["w1_t"].astype(bf),
                   preferred_element_type=jnp.float32) + params["b1"][0]
    h = _gelu_exact(h)
    out = jnp.einsum('bnh,hd->bnd', h.astype(bf), params["w2_t"].astype(bf),
                     preferred_element_type=jnp.float32) + params["b2"][0]
    return out + q1


def make_params(key, dim, mlp_ratio=4.0):
    hidden = int(dim * mlp_ratio)
    ks = jax.random.split(key, 6)
    return {
        # stored already transposed: (in_features, out_features)
        "wp_t": jax.random.normal(ks[0], (dim, dim), jnp.float32) * 0.02,
        "bp":   jax.random.normal(ks[1], (1, dim), jnp.float32) * 0.01,
        "gamma": jnp.ones((1, dim), jnp.float32),
        "beta":  jnp.zeros((1, dim), jnp.float32),
        "w1_t": jax.random.normal(ks[2], (dim, hidden), jnp.float32) * 0.02,
        "b1":   jax.random.normal(ks[3], (1, hidden), jnp.float32) * 0.01,
        "w2_t": jax.random.normal(ks[4], (hidden, dim), jnp.float32) * 0.02,
        "b2":   jax.random.normal(ks[5], (1, dim), jnp.float32) * 0.01,
    }


if __name__ == "__main__":
    B, N, D = 2, 16, 64           # batch, tokens, dim (module default dim=64)
    key = jax.random.PRNGKey(0)
    kq, kk, kv, kp = jax.random.split(key, 4)
    q = jax.random.normal(kq, (B, N, D), jnp.float32)
    k = jax.random.normal(kk, (B, N, D), jnp.float32)
    v = jax.random.normal(kv, (B, N, D), jnp.float32)
    params = make_params(kp, D, mlp_ratio=4.0)

    out = difference_module(q, k, v, params)
    out = jax.block_until_ready(out)
    assert out.shape == (B, N, D)

    # Tight check vs. a reference that uses the same bf16-operand / f32-acc
    # matmuls (and the same pre-scaled q / exact softmax) as the kernel.
    ref_matched = _reference_bf16_matmul(q, k, v, params)
    err_matched = float(jnp.max(jnp.abs(out - ref_matched)))
    assert jnp.allclose(out, ref_matched, atol=5e-3, rtol=5e-3), err_matched

    # Loose sanity check vs. the full-f32 reference (bf16 MXU operand rounding
    # is the only source of deviation).
    ref_f32 = _reference_f32(q, k, v, params)
    err_f32 = float(jnp.max(jnp.abs(out - ref_f32)))
    assert jnp.allclose(out, ref_f32, atol=5e-2, rtol=5e-2), err_f32

    print("KERNEL_OK")
</pallas_src>

<mosaic_0001>
module attributes {stable_mosaic.version = 11 : i64} {
  func.func @difference_module_kernel(%arg0: i32, %arg1: memref<2x16x64xf32, #tpu.memory_space<vmem>>, %arg2: memref<2x16x64xbf16, #tpu.memory_space<vmem>>, %arg3: memref<2x16x64xf32, #tpu.memory_space<vmem>>, %arg4: memref<64x64xbf16, #tpu.memory_space<vmem>>, %arg5: memref<64x256xbf16, #tpu.memory_space<vmem>>, %arg6: memref<256x64xbf16, #tpu.memory_space<vmem>>, %arg7: memref<5x256xf32, #tpu.memory_space<vmem>>, %arg8: memref<2x16x64xf32, #tpu.memory_space<vmem>>) attributes {dimension_semantics = [#tpu.dimension_semantics<parallel>], iteration_bounds = array<i64: 1>, scalar_prefetch = 0 : i64, scratch_operands = 0 : i64, tpu.core_type = #tpu.core_type<tc>, window_params = [{transform_indices = @transform_0, window_bounds = array<i64: 2, 16, 64>}, {transform_indices = @transform_1, window_bounds = array<i64: 2, 16, 64>}, {transform_indices = @transform_2, window_bounds = array<i64: 2, 16, 64>}, {pipeline_mode = #tpu.pipeline_mode<synchronous>, transform_indices = @transform_3, window_bounds = array<i64: 64, 64>}, {pipeline_mode = #tpu.pipeline_mode<synchronous>, transform_indices = @transform_4, window_bounds = array<i64: 64, 256>}, {pipeline_mode = #tpu.pipeline_mode<synchronous>, transform_indices = @transform_5, window_bounds = array<i64: 256, 64>}, {pipeline_mode = #tpu.pipeline_mode<synchronous>, transform_indices = @transform_6, window_bounds = array<i64: 5, 256>}, {transform_indices = @transform_7, window_bounds = array<i64: 2, 16, 64>}]} {
    %c0 = arith.constant 0 : index
    %c0_0 = arith.constant 0 : index
    %0 = vector.load %arg7[%c0, %c0_0] : memref<5x256xf32, #tpu.memory_space<vmem>>, vector<1x64xf32>
    %c1 = arith.constant 1 : index
    %c0_1 = arith.constant 0 : index
    %1 = vector.load %arg7[%c1, %c0_1] : memref<5x256xf32, #tpu.memory_space<vmem>>, vector<1x64xf32>
    %c2 = arith.constant 2 : index
    %c0_2 = arith.constant 0 : index
    %2 = vector.load %arg7[%c2, %c0_2] : memref<5x256xf32, #tpu.memory_space<vmem>>, vector<1x64xf32>
    %c3 = arith.constant 3 : index
    %c0_3 = arith.constant 0 : index
    %3 = vector.load %arg7[%c3, %c0_3] : memref<5x256xf32, #tpu.memory_space<vmem>>, vector<1x64xf32>
    %c4 = arith.constant 4 : index
    %c0_4 = arith.constant 0 : index
    %4 = vector.load %arg7[%c4, %c0_4] : memref<5x256xf32, #tpu.memory_space<vmem>>, vector<1x256xf32>
    %c0_5 = arith.constant 0 : index
    %c0_6 = arith.constant 0 : index
    %c0_7 = arith.constant 0 : index
    %5 = vector.load %arg1[%c0_5, %c0_6, %c0_7] : memref<2x16x64xf32, #tpu.memory_space<vmem>>, vector<2x16x64xf32>
    %c0_8 = arith.constant 0 : index
    %c0_9 = arith.constant 0 : index
    %c0_10 = arith.constant 0 : index
    %6 = vector.load %arg3[%c0_8, %c0_9, %c0_10] : memref<2x16x64xf32, #tpu.memory_space<vmem>>, vector<2x16x64xf32>
    %cst = arith.constant 1.250000e-01 : f32
    %7 = vector.broadcast %cst : f32 to vector<2x16x64xf32>
    %8 = arith.mulf %5, %7 : vector<2x16x64xf32>
    %9 = arith.truncf %8 : vector<2x16x64xf32> to vector<2x16x64xbf16>
    %c0_11 = arith.constant 0 : index
    %c0_12 = arith.constant 0 : index
    %c0_13 = arith.constant 0 : index
    %10 = vector.load %arg2[%c0_11, %c0_12, %c0_13] : memref<2x16x64xbf16, #tpu.memory_space<vmem>>, vector<2x16x64xbf16>
    %c0_14 = arith.constant 0 : index
    %c0_15 = arith.constant 0 : index
    %c0_16 = arith.constant 0 : index
    %11 = vector.load %arg3[%c0_14, %c0_15, %c0_16] : memref<2x16x64xf32, #tpu.memory_space<vmem>>, vector<2x16x64xf32>
    %12 = arith.truncf %11 : vector<2x16x64xf32> to vector<2x16x64xbf16>
    "tpu.trace_start"() <{level = 10 : i32, message = "bqd,bkd->bqk"}> : () -> ()
    %cst_17 = arith.constant dense<0.000000e+00> : vector<2x16x16xf32>
    %13 = tpu.matmul %9, %10, %cst_17 {dimension_numbers = #tpu.dot_dimension_numbers<[2], [2], [1], [1], [0, 0, 0, 1, 1, 1], [0], [0]>} : vector<2x16x64xbf16>, vector<2x16x64xbf16>, vector<2x16x16xf32> -> vector<2x16x16xf32>
    "tpu.trace_stop"() : () -> ()
    %cst_18 = arith.constant dense<0xFF800000> : vector<2x16xf32>
    %14 = vector.multi_reduction <maximumf>, %13, %cst_18 [2] : vector<2x16x16xf32> to vector<2x16xf32>
    %15 = vector.shape_cast %14 : vector<2x16xf32> to vector<2x16x1xf32>
    %16 = vector.broadcast %15 : vector<2x16x1xf32> to vector<2x16x16xf32>
    %17 = arith.subf %13, %16 : vector<2x16x16xf32>
    %18 = math.exp %17 : vector<2x16x16xf32>
    %cst_19 = arith.constant dense<0.000000e+00> : vector<2x16xf32>
    %19 = vector.multi_reduction <add>, %18, %cst_19 [2] : vector<2x16x16xf32> to vector<2x16xf32>
    %20 = vector.shape_cast %19 : vector<2x16xf32> to vector<2x16x1xf32>
    %21 = vector.broadcast %20 : vector<2x16x1xf32> to vector<2x16x16xf32>
    %22 = arith.divf %18, %21 : vector<2x16x16xf32>
    %23 = arith.truncf %22 : vector<2x16x16xf32> to vector<2x16x16xbf16>
    "tpu.trace_start"() <{level = 10 : i32, message = "bqk,bkd->bqd"}> : () -> ()
    %cst_20 = arith.constant dense<0.000000e+00> : vector<2x16x64xf32>
    %24 = tpu.matmul %23, %12, %cst_20 {dimension_numbers = #tpu.dot_dimension_numbers<[2], [1], [1], [2], [0, 0, 0, 1, 1, 2], [0], [0]>} : vector<2x16x16xbf16>, vector<2x16x64xbf16>, vector<2x16x64xf32> -> vector<2x16x64xf32>
    "tpu.trace_stop"() : () -> ()
    %25 = arith.subf %6, %24 : vector<2x16x64xf32>
    %26 = vector.shape_cast %25 : vector<2x16x64xf32> to vector<32x64xf32>
    %27 = arith.truncf %26 : vector<32x64xf32> to vector<32x64xbf16>
    %c0_21 = arith.constant 0 : index
    %c0_22 = arith.constant 0 : index
    %28 = vector.load %arg4[%c0_21, %c0_22] : memref<64x64xbf16, #tpu.memory_space<vmem>>, vector<64x64xbf16>
    %cst_23 = arith.constant dense<0.000000e+00> : vector<32x64xf32>
    %29 = tpu.matmul %27, %28, %cst_23 {dimension_numbers = #tpu.dot_dimension_numbers<[1], [0], [0], [1], [0, 0, 1, 1], [], []>} : vector<32x64xbf16>, vector<64x64xbf16>, vector<32x64xf32> -> vector<32x64xf32>
    %30 = vector.broadcast %0 : vector<1x64xf32> to vector<32x64xf32>
    %31 = arith.addf %29, %30 : vector<32x64xf32>
    %32 = vector.shape_cast %5 : vector<2x16x64xf32> to vector<32x64xf32>
    %33 = arith.addf %32, %31 : vector<32x64xf32>
    %cst_24 = arith.constant dense<0.000000e+00> : vector<32xf32>
    %34 = vector.multi_reduction <add>, %33, %cst_24 [1] : vector<32x64xf32> to vector<32xf32>
    %35 = vector.shape_cast %34 : vector<32xf32> to vector<32x1xf32>
    %cst_25 = arith.constant 6.400000e+01 : f32
    %36 = vector.broadcast %cst_25 : f32 to vector<32x1xf32>
    %37 = arith.divf %35, %36 : vector<32x1xf32>
    %38 = arith.mulf %33, %33 : vector<32x64xf32>
    %cst_26 = arith.constant dense<0.000000e+00> : vector<32xf32>
    %39 = vector.multi_reduction <add>, %38, %cst_26 [1] : vector<32x64xf32> to vector<32xf32>
    %40 = vector.shape_cast %39 : vector<32xf32> to vector<32x1xf32>
    %cst_27 = arith.constant 6.400000e+01 : f32
    %41 = vector.broadcast %cst_27 : f32 to vector<32x1xf32>
    %42 = arith.divf %40, %41 : vector<32x1xf32>
    %43 = arith.mulf %37, %37 : vector<32x1xf32>
    %44 = arith.subf %42, %43 : vector<32x1xf32>
    %45 = vector.broadcast %37 : vector<32x1xf32> to vector<32x64xf32>
    %46 = arith.subf %33, %45 : vector<32x64xf32>
    %cst_28 = arith.constant 9.99999974E-6 : f32
    %47 = vector.broadcast %cst_28 : f32 to vector<32x1xf32>
    %48 = arith.addf %44, %47 : vector<32x1xf32>
    %49 = math.rsqrt %48 : vector<32x1xf32>
    %50 = vector.broadcast %49 : vector<32x1xf32> to vector<32x64xf32>
    %51 = arith.mulf %46, %50 : vector<32x64xf32>
    %52 = vector.broadcast %1 : vector<1x64xf32> to vector<32x64xf32>
    %53 = arith.mulf %51, %52 : vector<32x64xf32>
    %54 = vector.broadcast %2 : vector<1x64xf32> to vector<32x64xf32>
    %55 = arith.addf %53, %54 : vector<32x64xf32>
    %56 = arith.truncf %55 : vector<32x64xf32> to vector<32x64xbf16>
    %c0_29 = arith.constant 0 : index
    %c0_30 = arith.constant 0 : index
    %57 = vector.load %arg5[%c0_29, %c0_30] : memref<64x256xbf16, #tpu.memory_space<vmem>>, vector<64x256xbf16>
    %cst_31 = arith.constant dense<0.000000e+00> : vector<32x256xf32>
    %58 = tpu.matmul %56, %57, %cst_31 {dimension_numbers = #tpu.dot_dimension_numbers<[1], [0], [0], [1], [0, 0, 1, 1], [], []>} : vector<32x64xbf16>, vector<64x256xbf16>, vector<32x256xf32> -> vector<32x256xf32>
    %59 = vector.broadcast %4 : vector<1x256xf32> to vector<32x256xf32>
    %60 = arith.addf %58, %59 : vector<32x256xf32>
    %cst_32 = arith.constant 5.000000e-01 : f32
    %61 = vector.broadcast %cst_32 : f32 to vector<32x256xf32>
    %62 = arith.mulf %61, %60 : vector<32x256xf32>
    %cst_33 = arith.constant 0.707106769 : f32
    %63 = vector.broadcast %cst_33 : f32 to vector<32x256xf32>
    %64 = arith.mulf %60, %63 : vector<32x256xf32>
    %65 = math.erf %64 : vector<32x256xf32>
    %cst_34 = arith.constant 1.000000e+00 : f32
    %66 = vector.broadcast %cst_34 : f32 to vector<32x256xf32>
    %67 = arith.addf %66, %65 : vector<32x256xf32>
    %68 = arith.mulf %62, %67 : vector<32x256xf32>
    %69 = arith.truncf %68 : vector<32x256xf32> to vector<32x256xbf16>
    %c0_35 = arith.constant 0 : index
    %c0_36 = arith.constant 0 : index
    %70 = vector.load %arg6[%c0_35, %c0_36] : memref<256x64xbf16, #tpu.memory_space<vmem>>, vector<256x64xbf16>
    %cst_37 = arith.constant dense<0.000000e+00> : vector<32x64xf32>
    %71 = tpu.matmul %69, %70, %cst_37 {dimension_numbers = #tpu.dot_dimension_numbers<[1], [0], [0], [1], [0, 0, 1, 1], [], []>} : vector<32x256xbf16>, vector<256x64xbf16>, vector<32x64xf32> -> vector<32x64xf32>
    %72 = vector.broadcast %3 : vector<1x64xf32> to vector<32x64xf32>
    %73 = arith.addf %71, %72 : vector<32x64xf32>
    %74 = arith.addf %73, %33 : vector<32x64xf32>
    %75 = vector.shape_cast %74 : vector<32x64xf32> to vector<2x16x64xf32>
    %c0_38 = arith.constant 0 : index
    %c0_39 = arith.constant 0 : index
    %c0_40 = arith.constant 0 : index
    %76 = vector.load %arg8[%c0_38, %c0_39, %c0_40] : memref<2x16x64xf32, #tpu.memory_space<vmem>>, vector<2x16x64xf32>
    tpu.vector_store %arg8[%c0_38, %c0_39, %c0_40], %75 {strides = array<i32>} : memref<2x16x64xf32, #tpu.memory_space<vmem>>, vector<2x16x64xf32>,
    return
  }
  func.func @transform_0(%arg0: i32) -> (i32, i32, i32) {
    %c0_i32 = arith.constant 0 : i32
    %c0_i32_0 = arith.constant 0 : i32
    %c0_i32_1 = arith.constant 0 : i32
    return %arg0, %c0_i32, %c0_i32_0 : i32, i32, i32
  }
  func.func @transform_1(%arg0: i32) -> (i32, i32, i32) {
    %c0_i32 = arith.constant 0 : i32
    %c0_i32_0 = arith.constant 0 : i32
    %c0_i32_1 = arith.constant 0 : i32
    return %arg0, %c0_i32, %c0_i32_0 : i32, i32, i32
  }
  func.func @transform_2(%arg0: i32) -> (i32, i32, i32) {
    %c0_i32 = arith.constant 0 : i32
    %c0_i32_0 = arith.constant 0 : i32
    %c0_i32_1 = arith.constant 0 : i32
    return %arg0, %c0_i32, %c0_i32_0 : i32, i32, i32
  }
  func.func @transform_3(%arg0: i32) -> (i32, i32) {
    %c0_i32 = arith.constant 0 : i32
    %c0_i32_0 = arith.constant 0 : i32
    %c0_i32_1 = arith.constant 0 : i32
    return %c0_i32, %c0_i32_0 : i32, i32
  }
  func.func @transform_4(%arg0: i32) -> (i32, i32) {
    %c0_i32 = arith.constant 0 : i32
    %c0_i32_0 = arith.constant 0 : i32
    %c0_i32_1 = arith.constant 0 : i32
    return %c0_i32, %c0_i32_0 : i32, i32
  }
  func.func @transform_5(%arg0: i32) -> (i32, i32) {
    %c0_i32 = arith.constant 0 : i32
    %c0_i32_0 = arith.constant 0 : i32
    %c0_i32_1 = arith.constant 0 : i32
    return %c0_i32, %c0_i32_0 : i32, i32
  }
  func.func @transform_6(%arg0: i32) -> (i32, i32) {
    %c0_i32 = arith.constant 0 : i32
    %c0_i32_0 = arith.constant 0 : i32
    %c0_i32_1 = arith.constant 0 : i32
    return %c0_i32, %c0_i32_0 : i32, i32
  }
  func.func @transform_7(%arg0: i32) -> (i32, i32, i32) {
    %c0_i32 = arith.constant 0 : i32
    %c0_i32_0 = arith.constant 0 : i32
    %c0_i32_1 = arith.constant 0 : i32
    return %arg0, %c0_i32, %c0_i32_0 : i32, i32, i32
  }
}

</mosaic_0001>

<llo_original>
// kernel: tpu_custom_call.1
$region0: #{tpu_custom_call.1}
  #allocation0 [shape = 'u32[]', space=smem, size = 0x4, offset = 0x4, fixed_abs, tag = 'smem constant byte address 0x4 - core index']
  #allocation1 [shape = 'u32[144,128]{1,0:T(1,128)}', space=vmem, size = 0x12000, scoped, tag = 'internal scratch']
  %s0 = inlined_call_operand.vmem [shape: f32[2,16,64], index: 0, kind: input, shape index: {}]
  %s1 = inlined_call_operand.vmem [shape: bf16[2,16,64], index: 1, kind: input, shape index: {}]
  %s2 = inlined_call_operand.vmem [shape: f32[2,16,64], index: 2, kind: input, shape index: {}]
  %s3 = inlined_call_operand.vmem [shape: bf16[64,64], index: 3, kind: input, shape index: {}]
  %s4 = inlined_call_operand.vmem [shape: bf16[64,256], index: 4, kind: input, shape index: {}]
  %s5 = inlined_call_operand.vmem [shape: bf16[256,64], index: 5, kind: input, shape index: {}]
  %s6 = inlined_call_operand.vmem [shape: f32[5,256], index: 6, kind: input, shape index: {}]
  %s7 = inlined_call_operand.hbm [shape: f32[2,16,64], index: 7, kind: output, shape index: {}]
  %s8 = sld [smem:[#allocation0]]
  $region38: #{tpu_custom_call.1} parent=0
    _
  %s10 = ssub.s32 1, %s8
  %s11 = scalar_select 0, %s10, %s8
  $region1: #{tpu_custom_call.1} parent=0
    #allocation2 [shape = 'u8[16384]{0}', space=vmem, size = 0x4000, scoped, tag = 'output window, operand 0, single buffered']
    #allocation3 [shape = 's32[1]{0}', space=sflag, size = 0x4, scoped, tag = 'scoped memory for tpu_custom_call.1']
    %12 = vsyncpa [#allocation3], 0
    // Predicated region
    $region2: #{tpu_custom_call.1} parent=1 // pred_check
      _
    $region3: #{tpu_custom_call.1} parent=1 // pred_check_branch
      %14 = sbr.rel (0) target = $region5
    $region4: #{tpu_custom_call.1} parent=1 // pred_region
      _
    $region5: #{tpu_custom_call.1} parent=1 // pred_fallthru
      _
    // Predicated region
    $region6: #{tpu_custom_call.1} parent=1 // pred_check
      _
    $region7: #{tpu_custom_call.1} parent=1 // pred_check_branch
      %16 = sbr.rel (0) target = $region9
    $region8: #{tpu_custom_call.1} parent=1 // pred_region
      _
    $region9: #{tpu_custom_call.1} parent=1 // pred_fallthru
      _
    // Predicated region
    $region10: #{tpu_custom_call.1} parent=1 // pred_check
      _
    $region11: #{tpu_custom_call.1} parent=1 // pred_check_branch
      %18 = sbr.rel (0) target = $region13
    $region12: #{tpu_custom_call.1} parent=1 // pred_region
      _
    $region13: #{tpu_custom_call.1} parent=1 // pred_fallthru
      _
    // Predicated region
    $region14: #{tpu_custom_call.1} parent=1 // pred_check
      _
    $region15: #{tpu_custom_call.1} parent=1 // pred_check_branch
      %20 = sbr.rel (0) target = $region17
    $region16: #{tpu_custom_call.1} parent=1 // pred_region
      _
    $region17: #{tpu_custom_call.1} parent=1 // pred_fallthru
      _
    // Predicated region
    $region18: #{tpu_custom_call.1} parent=1 // pred_check
      _
    $region19: #{tpu_custom_call.1} parent=1 // pred_check_branch
      %22 = sbr.rel (0) target = $region21
    $region20: #{tpu_custom_call.1} parent=1 // pred_region
      _
    $region21: #{tpu_custom_call.1} parent=1 // pred_fallthru
      _
    // Predicated region
    $region22: #{tpu_custom_call.1} parent=1 // pred_check
      _
    $region23: #{tpu_custom_call.1} parent=1 // pred_check_branch
      %24 = sbr.rel (0) target = $region25
    $region24: #{tpu_custom_call.1} parent=1 // pred_region
      _
    $region25: #{tpu_custom_call.1} parent=1 // pred_fallthru
      _
    // Predicated region
    $region26: #{tpu_custom_call.1} parent=1 // pred_check
      _
    $region27: #{tpu_custom_call.1} parent=1 // pred_check_branch
      %26 = sbr.rel (0) target = $region29
    $region28: #{tpu_custom_call.1} parent=1 // pred_region
      _
    $region29: #{tpu_custom_call.1} parent=1 // pred_fallthru
      _
    %v28 = vld [vmem:[%s6] ss:$0 sm:$0xff]
    %v29 = vld [vmem:[%s6 + $0x1] ss:$0 sm:$0xff]
    %v30 = vld [vmem:[%s6 + $0x2] ss:$0 sm:$0xff]
    %v31 = vld [vmem:[%s6 + $0x3] ss:$0 sm:$0xff]
    %s32 = scalar_lea.vmem %s6, 4
    %v33 = vld [vmem:[%s32] ss:$8 sm:$0x3]
    %v34 = vld [vmem:[%s0] sm:$0xff]
    %v35 = vld [vmem:[%s0 + $0x8] sm:$0xff]
    %v36 = vld [vmem:[%s0 + $0x10] sm:$0xff]
    %v37 = vld [vmem:[%s0 + $0x18] sm:$0xff]
    %v38 = vld [vmem:[%s2] sm:$0xff]
    %v39 = vld [vmem:[%s2 + $0x8] sm:$0xff]
    %v40 = vld [vmem:[%s2 + $0x10] sm:$0xff]
    %v41 = vld [vmem:[%s2 + $0x18] sm:$0xff]
    %v42 = vmul.f32 %v34, 0.125
    %v43 = vmul.f32 %v35, 0.125
    %v44 = vmul.f32 %v36, 0.125
    %v45 = vmul.f32 %v37, 0.125
    %v46 = vpack.c.bf16 %v43, %v42
    %v47 = vpack.c.bf16 %v45, %v44
    %v48 = vld [vmem:[%s1] sm:$0xf]
    %v49 = vld [vmem:[%s1 + $0x4] sm:$0xf]
    %v50 = vld [vmem:[%s1 + $0x8] sm:$0xf]
    %v51 = vld [vmem:[%s1 + $0xc] sm:$0xf]
    %v52 = vpack.c.bf16 %v39, %v38
    %v53 = vpack.c.bf16 %v41, %v40
    %v56 = vunpack.c.l.b16 %v48
    %v57 = vunpack.c.l.b16 %v49
    %v58 = vpack.c.b16 %v57, %v56
    %vm59 = vcmask 523264
    %v61 = vsel %vm59, %v46, 0
    %v64 = vsel %vm59, %v58, 0
    %66 = vmatprep.subr.bf16.mxu0 0
    %67 = vmatpush1.bf16.xpose.msra.mxu0 %v64
    %68 = vmatprep.subr.bf16.mxu0 0
    %69 = vmatpush1.bf16.xpose.msra.mxu0 0
    %70 = vmatprep.subr.bf16.mxu0 0
    %71 = vmatpush1.bf16.xpose.msra.mxu0 0
    %72 = vmatprep.subr.bf16.mxu0 0
    %73 = vmatpush1.bf16.xpose.msra.mxu0 0
    %74 = vmatprep.subr.bf16.mxu0 0
    %75 = vmatpush1.bf16.xpose.msra.mxu0 0
    %76 = vmatprep.subr.bf16.mxu0 0
    %77 = vmatpush1.bf16.xpose.msra.mxu0 0
    %78 = vmatprep.subr.bf16.mxu0 0
    %79 = vmatpush1.bf16.xpose.msra.mxu0 0
    %80 = vmatprep.subr.bf16.mxu0 0
    %81 = vmatpush1.bf16.xpose.msra.mxu0 0
    %82 = vmatprep.subr.bf16.mxu0 0
    %83 = vmatpush1.bf16.xpose.msra.mxu0 0
    %84 = vmatprep.subr.bf16.mxu0 0
    %85 = vmatpush1.bf16.xpose.msra.mxu0 0
    %86 = vmatprep.subr.bf16.mxu0 0
    %87 = vmatpush1.bf16.xpose.msra.mxu0 0
    %88 = vmatprep.subr.bf16.mxu0 0
    %89 = vmatpush1.bf16.xpose.msra.mxu0 0
    %90 = vmatprep.subr.bf16.mxu0 0
    %91 = vmatpush1.bf16.xpose.msra.mxu0 0
    %92 = vmatprep.subr.bf16.mxu0 0
    %93 = vmatpush1.bf16.xpose.msra.mxu0 0
    %94 = vmatprep.subr.bf16.mxu0 0
    %95 = vmatpush1.bf16.xpose.msra.mxu0 0
    %96 = vmatprep.subr.bf16.mxu0 0
    %97 = vmatpush1.bf16.xpose.msra.mxu0 0
    %98 = vmatprep.mubr.bf16.mxu0 0
    %99 = vmatmul.mubr.bf16.gmra.mrb[0].mxu0 %v61
    %v100 = vpop.f32.mrb[0].mxu0
    %v101 = vadd.f32 0.0, %v100
    %v102 = vpop.f32.mrb[0].mxu0
    %v103 = vpop.f32.mrb[0].mxu0
    %v104 = vadd.f32 0.0, %v103
    %v105 = vpop.f32.mrb[0].mxu0
    %106 = vdwg.mxu0
    %v109 = vunpack.c.l.b16 %v50
    %v110 = vunpack.c.l.b16 %v51
    %v111 = vpack.c.b16 %v110, %v109
    %v113 = vsel %vm59, %v47, 0
    %v116 = vsel %vm59, %v111, 0
    %118 = vmatprep.subr.bf16.mxu0 0
    %119 = vmatpush1.bf16.xpose.msra.mxu0 %v116
    %120 = vmatprep.subr.bf16.mxu0 0
    %121 = vmatpush1.bf16.xpose.msra.mxu0 0
    %122 = vmatprep.subr.bf16.mxu0 0
    %123 = vmatpush1.bf16.xpose.msra.mxu0 0
    %124 = vmatprep.subr.bf16.mxu0 0
    %125 = vmatpush1.bf16.xpose.msra.mxu0 0
    %126 = vmatprep.subr.bf16.mxu0 0
    %127 = vmatpush1.bf16.xpose.msra.mxu0 0
    %128 = vmatprep.subr.bf16.mxu0 0
    %129 = vmatpush1.bf16.xpose.msra.mxu0 0
    %130 = vmatprep.subr.bf16.mxu0 0
    %131 = vmatpush1.bf16.xpose.msra.mxu0 0
    %132 = vmatprep.subr.bf16.mxu0 0
    %133 = vmatpush1.bf16.xpose.msra.mxu0 0
    %134 = vmatprep.subr.bf16.mxu0 0
    %135 = vmatpush1.bf16.xpose.msra.mxu0 0
    %136 = vmatprep.subr.bf16.mxu0 0
    %137 = vmatpush1.bf16.xpose.msra.mxu0 0
    %138 = vmatprep.subr.bf16.mxu0 0
    %139 = vmatpush1.bf16.xpose.msra.mxu0 0
    %140 = vmatprep.subr.bf16.mxu0 0
    %141 = vmatpush1.bf16.xpose.msra.mxu0 0
    %142 = vmatprep.subr.bf16.mxu0 0
    %143 = vmatpush1.bf16.xpose.msra.mxu0 0
    %144 = vmatprep.subr.bf16.mxu0 0
    %145 = vmatpush1.bf16.xpose.msra.mxu0 0
    %146 = vmatprep.subr.bf16.mxu0 0
    %147 = vmatpush1.bf16.xpose.msra.mxu0 0
    %148 = vmatprep.subr.bf16.mxu0 0
    %149 = vmatpush1.bf16.xpose.msra.mxu0 0
    %150 = vmatprep.mubr.bf16.mxu0 0
    %151 = vmatmul.mubr.bf16.gmra.mrb[0].mxu0 %v113
    %v152 = vpop.f32.mrb[0].mxu0
    %v153 = vadd.f32 0.0, %v152
    %v154 = vpop.f32.mrb[0].mxu0
    %v155 = vpop.f32.mrb[0].mxu0
    %v156 = vadd.f32 0.0, %v155
    %v157 = vpop.f32.mrb[0].mxu0
    %158 = vdwg.mxu0
    %vm159 = vcmask 130048
    %v160 = vsel %vm159, %v101, -inf
    %161 = vmax.xlane.f32.xlu0 %v160
    %v162 = vpop.xlane.xlu0 %161
    %v163 = vsel %vm159, %v104, -inf
    %164 = vmax.xlane.f32.xlu0 %v163
    %v165 = vpop.xlane.xlu0 %164
    %v166 = vsel %vm159, %v153, -inf
    %167 = vmax.xlane.f32.xlu0 %v166
    %v168 = vpop.xlane.xlu0 %167
    %v169 = vsel %vm159, %v156, -inf
    %170 = vmax.xlane.f32.xlu0 %v169
    %v171 = vpop.xlane.xlu0 %170
    %v172 = vsub.f32 %v101, %v162
    %v173 = vsub.f32 %v104, %v165
    %v174 = vsub.f32 %v153, %v168
    %v175 = vsub.f32 %v156, %v171
    %v176 = vmul.f32 %v172, 1.442695
    %v177 = vpow.pop %v176
    %v178 = vmul.f32 %v173, 1.442695
    %v179 = vpow.pop %v178
    %v180 = vmul.f32 %v174, 1.442695
    %v181 = vpow.pop %v180
    %v182 = vmul.f32 %v175, 1.442695
    %v183 = vpow.pop %v182
    %v184 = vsel %vm159, %v177, 0.0
    %185 = vadd.xlane.f32.xlu0 %v184
    %v186 = vpop.xlane.xlu0 %185
    %v187 = vsel %vm159, %v179, 0.0
    %188 = vadd.xlane.f32.xlu0 %v187
    %v189 = vpop.xlane.xlu0 %188
    %v190 = vsel %vm159, %v181, 0.0
    %191 = vadd.xlane.f32.xlu0 %v190
    %v192 = vpop.xlane.xlu0 %191
    %v193 = vsel %vm159, %v183, 0.0
    %194 = vadd.xlane.f32.xlu0 %v193
    %v195 = vpop.xlane.xlu0 %194
    %v196 = vrcp.pop %v186
    %v197 = vmul.f32 %v177, %v196
    %v198 = vrcp.pop %v189
    %v199 = vmul.f32 %v179, %v198
    %v200 = vrcp.pop %v192
    %v201 = vmul.f32 %v181, %v200
    %v202 = vrcp.pop %v195
    %v203 = vmul.f32 %v183, %v202
    %v204 = vpack.c.bf16 %v199, %v197
    %v205 = vpack.c.bf16 %v203, %v201
    %v207 = vsel %vm159, %v204, 0
    %209 = vmatprep.subr.bf16.mxu0 0
    %210 = vmatpush1.bf16.msra.mxu0 %v52
    %211 = vmatprep.subr.bf16.mxu0 0
    %212 = vmatpush1.bf16.msra.mxu0 0
    %213 = vmatprep.subr.bf16.mxu0 0
    %214 = vmatpush1.bf16.msra.mxu0 0
    %215 = vmatprep.subr.bf16.mxu0 0
    %216 = vmatpush1.bf16.msra.mxu0 0
    %217 = vmatprep.subr.bf16.mxu0 0
    %218 = vmatpush1.bf16.msra.mxu0 0
    %219 = vmatprep.subr.bf16.mxu0 0
    %220 = vmatpush1.bf16.msra.mxu0 0
    %221 = vmatprep.subr.bf16.mxu0 0
    %222 = vmatpush1.bf16.msra.mxu0 0
    %223 = vmatprep.subr.bf16.mxu0 0
    %224 = vmatpush1.bf16.msra.mxu0 0
    %225 = vmatprep.subr.bf16.mxu0 0
    %226 = vmatpush1.bf16.msra.mxu0 0
    %227 = vmatprep.subr.bf16.mxu0 0
    %228 = vmatpush1.bf16.msra.mxu0 0
    %229 = vmatprep.subr.bf16.mxu0 0
    %230 = vmatpush1.bf16.msra.mxu0 0
    %231 = vmatprep.subr.bf16.mxu0 0
    %232 = vmatpush1.bf16.msra.mxu0 0
    %233 = vmatprep.subr.bf16.mxu0 0
    %234 = vmatpush1.bf16.msra.mxu0 0
    %235 = vmatprep.subr.bf16.mxu0 0
    %236 = vmatpush1.bf16.msra.mxu0 0
    %237 = vmatprep.subr.bf16.mxu0 0
    %238 = vmatpush1.bf16.msra.mxu0 0
    %239 = vmatprep.subr.bf16.mxu0 0
    %240 = vmatpush1.bf16.msra.mxu0 0
    %241 = vmatprep.mubr.bf16.mxu0 0
    %242 = vmatmul.mubr.bf16.gmra.mrb[0].mxu0 %v207
    %v243 = vpop.f32.mrb[0].mxu0
    %v244 = vadd.f32 0.0, %v243
    %v245 = vpop.f32.mrb[0].mxu0
    %v246 = vpop.f32.mrb[0].mxu0
    %v247 = vadd.f32 0.0, %v246
    %v248 = vpop.f32.mrb[0].mxu0
    %249 = vdwg.mxu0
    %v251 = vsel %vm159, %v205, 0
    %253 = vmatprep.subr.bf16.mxu0 0
    %254 = vmatpush1.bf16.msra.mxu0 %v53
    %255 = vmatprep.subr.bf16.mxu0 0
    %256 = vmatpush1.bf16.msra.mxu0 0
    %257 = vmatprep.subr.bf16.mxu0 0
    %258 = vmatpush1.bf16.msra.mxu0 0
    %259 = vmatprep.subr.bf16.mxu0 0
    %260 = vmatpush1.bf16.msra.mxu0 0
    %261 = vmatprep.subr.bf16.mxu0 0
    %262 = vmatpush1.bf16.msra.mxu0 0
    %263 = vmatprep.subr.bf16.mxu0 0
    %264 = vmatpush1.bf16.msra.mxu0 0
    %265 = vmatprep.subr.bf16.mxu0 0
    %266 = vmatpush1.bf16.msra.mxu0 0
    %267 = vmatprep.subr.bf16.mxu0 0
    %268 = vmatpush1.bf16.msra.mxu0 0
    %269 = vmatprep.subr.bf16.mxu0 0
    %270 = vmatpush1.bf16.msra.mxu0 0
    %271 = vmatprep.subr.bf16.mxu0 0
    %272 = vmatpush1.bf16.msra.mxu0 0
    %273 = vmatprep.subr.bf16.mxu0 0
    %274 = vmatpush1.bf16.msra.mxu0 0
    %275 = vmatprep.subr.bf16.mxu0 0
    %276 = vmatpush1.bf16.msra.mxu0 0
    %277 = vmatprep.subr.bf16.mxu0 0
    %278 = vmatpush1.bf16.msra.mxu0 0
    %279 = vmatprep.subr.bf16.mxu0 0
    %280 = vmatpush1.bf16.msra.mxu0 0
    %281 = vmatprep.subr.bf16.mxu0 0
    %282 = vmatpush1.bf16.msra.mxu0 0
    %283 = vmatprep.subr.bf16.mxu0 0
    %284 = vmatpush1.bf16.msra.mxu0 0
    %285 = vmatprep.mubr.bf16.mxu0 0
    %286 = vmatmul.mubr.bf16.gmra.mrb[0].mxu0 %v251
    %v287 = vpop.f32.mrb[0].mxu0
    %v288 = vadd.f32 0.0, %v287
    %v289 = vpop.f32.mrb[0].mxu0
    %v290 = vpop.f32.mrb[0].mxu0
    %v291 = vadd.f32 0.0, %v290
    %v292 = vpop.f32.mrb[0].mxu0
    %293 = vdwg.mxu0
    %v294 = vsub.f32 %v38, %v244
    %v295 = vsub.f32 %v39, %v247
    %v296 = vsub.f32 %v40, %v288
    %v297 = vsub.f32 %v41, %v291
    %v298 = vpack.c.bf16 %v295, %v294
    %v299 = vpack.c.bf16 %v297, %v296
    %v300 = vld [vmem:[%s3] sm:$0xf]
    %v301 = vld [vmem:[%s3 + $0x4] sm:$0xf]
    %v302 = vld [vmem:[%s3 + $0x8] sm:$0xf]
    %v303 = vld [vmem:[%s3 + $0xc] sm:$0xf]
    %v304 = vld [vmem:[%s3 + $0x10] sm:$0xf]
    %v305 = vld [vmem:[%s3 + $0x14] sm:$0xf]
    %v306 = vld [vmem:[%s3 + $0x18] sm:$0xf]
    %v307 = vld [vmem:[%s3 + $0x1c] sm:$0xf]
    %v316 = vunpack.c.l.b16 %v300
    %v317 = vunpack.c.l.b16 %v301
    %v318 = vunpack.c.l.b16 %v302
    %v319 = vunpack.c.l.b16 %v303
    %v320 = vunpack.c.l.b16 %v304
    %v321 = vunpack.c.l.b16 %v305
    %v322 = vunpack.c.l.b16 %v306
    %v323 = vunpack.c.l.b16 %v307
    %v324 = vpack.c.b16 %v317, %v316
    %v325 = vpack.c.b16 %v319, %v318
    %v326 = vpack.c.b16 %v321, %v320
    %v327 = vpack.c.b16 %v323, %v322
    %v333 = vsel %vm59, %v298, 0
    %v336 = vsel %vm59, %v299, 0
    %338 = vmatprep.subr.bf16.mxu0 0
    %339 = vmatpush1.bf16.msra.mxu0 %v324
    %340 = vmatprep.subr.bf16.mxu0 0
    %341 = vmatpush1.bf16.msra.mxu0 %v325
    %342 = vmatprep.subr.bf16.mxu0 0
    %343 = vmatpush1.bf16.msra.mxu0 %v326
    %344 = vmatprep.subr.bf16.mxu0 0
    %345 = vmatpush1.bf16.msra.mxu0 %v327
    %346 = vmatprep.subr.bf16.mxu0 0
    %347 = vmatpush1.bf16.msra.mxu0 0
    %348 = vmatprep.subr.bf16.mxu0 0
    %349 = vmatpush1.bf16.msra.mxu0 0
    %350 = vmatprep.subr.bf16.mxu0 0
    %351 = vmatpush1.bf16.msra.mxu0 0
    %352 = vmatprep.subr.bf16.mxu0 0
    %353 = vmatpush1.bf16.msra.mxu0 0
    %354 = vmatprep.subr.bf16.mxu0 0
    %355 = vmatpush1.bf16.msra.mxu0 0
    %356 = vmatprep.subr.bf16.mxu0 0
    %357 = vmatpush1.bf16.msra.mxu0 0
    %358 = vmatprep.subr.bf16.mxu0 0
    %359 = vmatpush1.bf16.msra.mxu0 0
    %360 = vmatprep.subr.bf16.mxu0 0
    %361 = vmatpush1.bf16.msra.mxu0 0
    %362 = vmatprep.subr.bf16.mxu0 0
    %363 = vmatpush1.bf16.msra.mxu0 0
    %364 = vmatprep.subr.bf16.mxu0 0
    %365 = vmatpush1.bf16.msra.mxu0 0
    %366 = vmatprep.subr.bf16.mxu0 0
    %367 = vmatpush1.bf16.msra.mxu0 0
    %368 = vmatprep.subr.bf16.mxu0 0
    %369 = vmatpush1.bf16.msra.mxu0 0
    %370 = vmatprep.mubr.bf16.mxu0 0
    %371 = vmatmul.mubr.bf16.gmra.mrb[0].mxu0 %v333
    %v372 = vpop.f32.mrb[0].mxu0
    %v373 = vadd.f32 %v28, %v372
    %v374 = vpop.f32.mrb[0].mxu0
    %v375 = vpop.f32.mrb[0].mxu0
    %v376 = vadd.f32 %v28, %v375
    %v377 = vpop.f32.mrb[0].mxu0
    %378 = vmatprep.mubr.bf16.mxu0 0
    %379 = vmatmul.mubr.bf16.gmra.mrb[0].mxu0 %v336
    %v380 = vpop.f32.mrb[0].mxu0
    %v381 = vadd.f32 %v28, %v380
    %v382 = vpop.f32.mrb[0].mxu0
    %v383 = vpop.f32.mrb[0].mxu0
    %v384 = vadd.f32 %v28, %v383
    %v385 = vpop.f32.mrb[0].mxu0
    %386 = vdwg.mxu0
    %v387 = vadd.f32 %v34, %v373
    %v388 = vadd.f32 %v35, %v376
    %v389 = vadd.f32 %v36, %v381
    %v390 = vadd.f32 %v37, %v384
    %v391 = vsel %vm59, %v387, 0.0
    %392 = vadd.xlane.f32.xlu0 %v391
    %v393 = vpop.xlane.xlu0 %392
    %v394 = vsel %vm59, %v388, 0.0
    %395 = vadd.xlane.f32.xlu0 %v394
    %v396 = vpop.xlane.xlu0 %395
    %v397 = vsel %vm59, %v389, 0.0
    %398 = vadd.xlane.f32.xlu0 %v397
    %v399 = vpop.xlane.xlu0 %398
    %v400 = vsel %vm59, %v390, 0.0
    %401 = vadd.xlane.f32.xlu0 %v400
    %v402 = vpop.xlane.xlu0 %401
    %v403 = vrcp.pop 64.0
    %v404 = vmul.f32 %v393, %v403
    %v405 = vmul.f32 %v396, %v403
    %v406 = vmul.f32 %v399, %v403
    %v407 = vmul.f32 %v402, %v403
    %v408 = vmul.f32 %v387, %v387
    %v409 = vmul.f32 %v388, %v388
    %v410 = vmul.f32 %v389, %v389
    %v411 = vmul.f32 %v390, %v390
    %v412 = vsel %vm59, %v408, 0.0
    %413 = vadd.xlane.f32.xlu0 %v412
    %v414 = vpop.xlane.xlu0 %413
    %v415 = vsel %vm59, %v409, 0.0
    %416 = vadd.xlane.f32.xlu0 %v415
    %v417 = vpop.xlane.xlu0 %416
    %v418 = vsel %vm59, %v410, 0.0
    %419 = vadd.xlane.f32.xlu0 %v418
    %v420 = vpop.xlane.xlu0 %419
    %v421 = vsel %vm59, %v411, 0.0
    %422 = vadd.xlane.f32.xlu0 %v421
    %v423 = vpop.xlane.xlu0 %422
    %v424 = vmul.f32 %v414, %v403
    %v425 = vmul.f32 %v417, %v403
    %v426 = vmul.f32 %v420, %v403
    %v427 = vmul.f32 %v423, %v403
    %v428 = vmul.f32 %v404, %v404
    %v429 = vmul.f32 %v405, %v405
    %v430 = vmul.f32 %v406, %v406
    %v431 = vmul.f32 %v407, %v407
    %v432 = vsub.f32 %v424, %v428
    %v433 = vsub.f32 %v425, %v429
    %v434 = vsub.f32 %v426, %v430
    %v435 = vsub.f32 %v427, %v431
    %v436 = vsub.f32 %v387, %v404
    %v437 = vsub.f32 %v388, %v405
    %v438 = vsub.f32 %v389, %v406
    %v439 = vsub.f32 %v390, %v407
    %v440 = vadd.f32 %v432, 1e-05
    %v441 = vadd.f32 %v433, 1e-05
    %v442 = vadd.f32 %v434, 1e-05
    %v443 = vadd.f32 %v435, 1e-05
    %v444 = vrsqrt.pop %v440
    %v445 = vrsqrt.pop %v441
    %v446 = vrsqrt.pop %v442
    %v447 = vrsqrt.pop %v443
    %v448 = vmul.f32 %v436, %v444
    %v449 = vmul.f32 %v437, %v445
    %v450 = vmul.f32 %v438, %v446
    %v451 = vmul.f32 %v439, %v447
    %v452 = vmul.f32 %v448, %v29
    %v453 = vmul.f32 %v449, %v29
    %v454 = vmul.f32 %v450, %v29
    %v455 = vmul.f32 %v451, %v29
    %v456 = vadd.f32 %v452, %v30
    %v457 = vadd.f32 %v453, %v30
    %v458 = vadd.f32 %v454, %v30
    %v459 = vadd.f32 %v455, %v30
    %v460 = vpack.c.bf16 %v457, %v456
    %v461 = vpack.c.bf16 %v459, %v458
    %v462 = vld [vmem:[%s4] sm:$0xff]
    %v463 = vld [vmem:[%s4 + $0x8] sm:$0xff]
    %v464 = vld [vmem:[%s4 + $0x10] sm:$0xff]
    %v465 = vld [vmem:[%s4 + $0x18] sm:$0xff]
    %v466 = vld [vmem:[%s4 + $0x20] sm:$0xff]
    %v467 = vld [vmem:[%s4 + $0x28] sm:$0xff]
    %v468 = vld [vmem:[%s4 + $0x30] sm:$0xff]
    %v469 = vld [vmem:[%s4 + $0x38] sm:$0xff]
    %v471 = vlaneseq
    %v472 = vshrl.u32 %v471, 7
    %v473 = vsub.s32 0, %v472
    %v474 = vrot.slane %v33, %v473
    %v475 = vlaneseq
    %v476 = vshrl.u32 %v475, 7
    %v477 = vsub.s32 1, %v476
    %v478 = vrot.slane %v33, %v477
    %v489 = vunpack.c.l.b16 %v462
    %v490 = vunpack.c.h.b16 %v462
    %v491 = vunpack.c.l.b16 %v463
    %v492 = vunpack.c.h.b16 %v463
    %v493 = vunpack.c.l.b16 %v464
    %v494 = vunpack.c.h.b16 %v464
    %v495 = vunpack.c.l.b16 %v465
    %v496 = vunpack.c.h.b16 %v465
    %v497 = vunpack.c.l.b16 %v466
    %v498 = vunpack.c.h.b16 %v466
    %v499 = vunpack.c.l.b16 %v467
    %v500 = vunpack.c.h.b16 %v467
    %v501 = vunpack.c.l.b16 %v468
    %v502 = vunpack.c.h.b16 %v468
    %v503 = vunpack.c.l.b16 %v469
    %v504 = vunpack.c.h.b16 %v469
    %v505 = vpack.c.b16 %v491, %v489
    %v506 = vpack.c.b16 %v492, %v490
    %v507 = vpack.c.b16 %v495, %v493
    %v508 = vpack.c.b16 %v496, %v494
    %v509 = vpack.c.b16 %v499, %v497
    %v510 = vpack.c.b16 %v500, %v498
    %v511 = vpack.c.b16 %v503, %v501
    %v512 = vpack.c.b16 %v504, %v502
    %v522 = vsel %vm59, %v460, 0
    %v525 = vsel %vm59, %v461, 0
    %527 = vmatprep.subr.bf16.mxu0 %v506
    %528 = vmatpush1.bf16.msra.mxu0 %v505
    %529 = vmatprep.subr.bf16.mxu0 %v508
    %530 = vmatpush1.bf16.msra.mxu0 %v507
    %531 = vmatprep.subr.bf16.mxu0 %v510
    %532 = vmatpush1.bf16.msra.mxu0 %v509
    %533 = vmatprep.subr.bf16.mxu0 %v512
    %534 = vmatpush1.bf16.msra.mxu0 %v511
    %535 = vmatprep.subr.bf16.mxu0 0
    %536 = vmatpush1.bf16.msra.mxu0 0
    %537 = vmatprep.subr.bf16.mxu0 0
    %538 = vmatpush1.bf16.msra.mxu0 0
    %539 = vmatprep.subr.bf16.mxu0 0
    %540 = vmatpush1.bf16.msra.mxu0 0
    %541 = vmatprep.subr.bf16.mxu0 0
    %542 = vmatpush1.bf16.msra.mxu0 0
    %543 = vmatprep.subr.bf16.mxu0 0
    %544 = vmatpush1.bf16.msra.mxu0 0
    %545 = vmatprep.subr.bf16.mxu0 0
    %546 = vmatpush1.bf16.msra.mxu0 0
    %547 = vmatprep.subr.bf16.mxu0 0
    %548 = vmatpush1.bf16.msra.mxu0 0
    %549 = vmatprep.subr.bf16.mxu0 0
    %550 = vmatpush1.bf16.msra.mxu0 0
    %551 = vmatprep.subr.bf16.mxu0 0
    %552 = vmatpush1.bf16.msra.mxu0 0
    %553 = vmatprep.subr.bf16.mxu0 0
    %554 = vmatpush1.bf16.msra.mxu0 0
    %555 = vmatprep.subr.bf16.mxu0 0
    %556 = vmatpush1.bf16.msra.mxu0 0
    %557 = vmatprep.subr.bf16.mxu0 0
    %558 = vmatpush1.bf16.msra.mxu0 0
    %559 = vmatprep.mubr.bf16.mxu0 0
    %560 = vmatmul.mubr.bf16.gmra.mrb[0].mxu0 %v522
    %v561 = vpop.f32.mrb[0].mxu0
    %v562 = vadd.f32 %v474, %v561
    %v563 = vpop.f32.mrb[0].mxu0
    %v564 = vadd.f32 %v478, %v563
    %v565 = vpop.f32.mrb[0].mxu0
    %v566 = vadd.f32 %v474, %v565
    %v567 = vpop.f32.mrb[0].mxu0
    %v568 = vadd.f32 %v478, %v567
    %569 = vmatprep.mubr.bf16.mxu0 0
    %570 = vmatmul.mubr.bf16.gmra.mrb[0].mxu0 %v525
    %v571 = vpop.f32.mrb[0].mxu0
    %v572 = vadd.f32 %v474, %v571
    %v573 = vpop.f32.mrb[0].mxu0
    %v574 = vadd.f32 %v478, %v573
    %v575 = vpop.f32.mrb[0].mxu0
    %v576 = vadd.f32 %v474, %v575
    %v577 = vpop.f32.mrb[0].mxu0
    %v578 = vadd.f32 %v478, %v577
    %579 = vdwg.mxu0
    %v580 = vmul.f32 %v562, 0.5
    %v581 = vmul.f32 %v564, 0.5
    %v582 = vmul.f32 %v566, 0.5
    %v583 = vmul.f32 %v568, 0.5
    %v584 = vmul.f32 %v572, 0.5
    %v585 = vmul.f32 %v574, 0.5
    %v586 = vmul.f32 %v576, 0.5
    %v587 = vmul.f32 %v578, 0.5
    %v588 = vmul.f32 %v562, 0.70710677
    %v589 = vmul.f32 %v564, 0.70710677
    %v590 = vmul.f32 %v566, 0.70710677
    %v591 = vmul.f32 %v568, 0.70710677
    %v592 = vmul.f32 %v572, 0.70710677
    %v593 = vmul.f32 %v574, 0.70710677
    %v594 = vmul.f32 %v576, 0.70710677
    %v595 = vmul.f32 %v578, 0.70710677
    %v596 = verf.f32.pop %v588
    %v597 = verf.f32.pop %v589
    %v598 = verf.f32.pop %v590
    %v599 = verf.f32.pop %v591
    %v600 = verf.f32.pop %v592
    %v601 = verf.f32.pop %v593
    %v602 = verf.f32.pop %v594
    %v603 = verf.f32.pop %v595
    %v604 = vadd.f32 %v596, 1.0
    %v605 = vadd.f32 %v597, 1.0
    %v606 = vadd.f32 %v598, 1.0
    %v607 = vadd.f32 %v599, 1.0
    %v608 = vadd.f32 %v600, 1.0
    %v609 = vadd.f32 %v601, 1.0
    %v610 = vadd.f32 %v602, 1.0
    %v611 = vadd.f32 %v603, 1.0
    %v612 = vmul.f32 %v580, %v604
    %v613 = vmul.f32 %v581, %v605
    %v614 = vmul.f32 %v582, %v606
    %v615 = vmul.f32 %v583, %v607
    %v616 = vmul.f32 %v584, %v608
    %v617 = vmul.f32 %v585, %v609
    %v618 = vmul.f32 %v586, %v610
    %v619 = vmul.f32 %v587, %v611
    %v620 = vpack.c.bf16 %v614, %v612
    %v621 = vpack.c.bf16 %v615, %v613
    %v622 = vpack.c.bf16 %v618, %v616
    %v623 = vpack.c.bf16 %v619, %v617
    %v624 = vld [vmem:[%s5] sm:$0xf]
    %v625 = vld [vmem:[%s5 + $0x4] sm:$0xf]
    %v626 = vld [vmem:[%s5 + $0x8] sm:$0xf]
    %v627 = vld [vmem:[%s5 + $0xc] sm:$0xf]
    %v628 = vld [vmem:[%s5 + $0x10] sm:$0xf]
    %v629 = vld [vmem:[%s5 + $0x14] sm:$0xf]
    %v630 = vld [vmem:[%s5 + $0x18] sm:$0xf]
    %v631 = vld [vmem:[%s5 + $0x1c] sm:$0xf]
    %v632 = vld [vmem:[%s5 + $0x20] sm:$0xf]
    %v633 = vld [vmem:[%s5 + $0x24] sm:$0xf]
    %v634 = vld [vmem:[%s5 + $0x28] sm:$0xf]
    %v635 = vld [vmem:[%s5 + $0x2c] sm:$0xf]
    %v636 = vld [vmem:[%s5 + $0x30] sm:$0xf]
    %v637 = vld [vmem:[%s5 + $0x34] sm:$0xf]
    %v638 = vld [vmem:[%s5 + $0x38] sm:$0xf]
    %v639 = vld [vmem:[%s5 + $0x3c] sm:$0xf]
    %v640 = vld [vmem:[%s5 + $0x40] sm:$0xf]
    %v641 = vld [vmem:[%s5 + $0x44] sm:$0xf]
    %v642 = vld [vmem:[%s5 + $0x48] sm:$0xf]
    %v643 = vld [vmem:[%s5 + $0x4c] sm:$0xf]
    %v644 = vld [vmem:[%s5 + $0x50] sm:$0xf]
    %v645 = vld [vmem:[%s5 + $0x54] sm:$0xf]
    %v646 = vld [vmem:[%s5 + $0x58] sm:$0xf]
    %v647 = vld [vmem:[%s5 + $0x5c] sm:$0xf]
    %v648 = vld [vmem:[%s5 + $0x60] sm:$0xf]
    %v649 = vld [vmem:[%s5 + $0x64] sm:$0xf]
    %v650 = vld [vmem:[%s5 + $0x68] sm:$0xf]
    %v651 = vld [vmem:[%s5 + $0x6c] sm:$0xf]
    %v652 = vld [vmem:[%s5 + $0x70] sm:$0xf]
    %v653 = vld [vmem:[%s5 + $0x74] sm:$0xf]
    %v654 = vld [vmem:[%s5 + $0x78] sm:$0xf]
    %v655 = vld [vmem:[%s5 + $0x7c] sm:$0xf]
    %v688 = vunpack.c.l.b16 %v624
    %v689 = vunpack.c.l.b16 %v625
    %v690 = vunpack.c.l.b16 %v626
    %v691 = vunpack.c.l.b16 %v627
    %v692 = vunpack.c.l.b16 %v628
    %v693 = vunpack.c.l.b16 %v629
    %v694 = vunpack.c.l.b16 %v630
    %v695 = vunpack.c.l.b16 %v631
    %v696 = vunpack.c.l.b16 %v632
    %v697 = vunpack.c.l.b16 %v633
    %v698 = vunpack.c.l.b16 %v634
    %v699 = vunpack.c.l.b16 %v635
    %v700 = vunpack.c.l.b16 %v636
    %v701 = vunpack.c.l.b16 %v637
    %v702 = vunpack.c.l.b16 %v638
    %v703 = vunpack.c.l.b16 %v639
    %v704 = vunpack.c.l.b16 %v640
    %v705 = vunpack.c.l.b16 %v641
    %v706 = vunpack.c.l.b16 %v642
    %v707 = vunpack.c.l.b16 %v643
    %v708 = vunpack.c.l.b16 %v644
    %v709 = vunpack.c.l.b16 %v645
    %v710 = vunpack.c.l.b16 %v646
    %v711 = vunpack.c.l.b16 %v647
    %v712 = vunpack.c.l.b16 %v648
    %v713 = vunpack.c.l.b16 %v649
    %v714 = vunpack.c.l.b16 %v650
    %v715 = vunpack.c.l.b16 %v651
    %v716 = vunpack.c.l.b16 %v652
    %v717 = vunpack.c.l.b16 %v653
    %v718 = vunpack.c.l.b16 %v654
    %v719 = vunpack.c.l.b16 %v655
    %v720 = vpack.c.b16 %v689, %v688
    %v721 = vpack.c.b16 %v691, %v690
    %v722 = vpack.c.b16 %v693, %v692
    %v723 = vpack.c.b16 %v695, %v694
    %v724 = vpack.c.b16 %v697, %v696
    %v725 = vpack.c.b16 %v699, %v698
    %v726 = vpack.c.b16 %v701, %v700
    %v727 = vpack.c.b16 %v703, %v702
    %v728 = vpack.c.b16 %v705, %v704
    %v729 = vpack.c.b16 %v707, %v706
    %v730 = vpack.c.b16 %v709, %v708
    %v731 = vpack.c.b16 %v711, %v710
    %v732 = vpack.c.b16 %v713, %v712
    %v733 = vpack.c.b16 %v715, %v714
    %v734 = vpack.c.b16 %v717, %v716
    %v735 = vpack.c.b16 %v719, %v718
    %752 = vmatprep.subr.bf16.mxu0 0
    %753 = vmatpush1.bf16.msra.mxu0 %v720
    %754 = vmatprep.subr.bf16.mxu0 0
    %755 = vmatpush1.bf16.msra.mxu0 %v721
    %756 = vmatprep.subr.bf16.mxu0 0
    %757 = vmatpush1.bf16.msra.mxu0 %v722
    %758 = vmatprep.subr.bf16.mxu0 0
    %759 = vmatpush1.bf16.msra.mxu0 %v723
    %760 = vmatprep.subr.bf16.mxu0 0
    %761 = vmatpush1.bf16.msra.mxu0 %v724
    %762 = vmatprep.subr.bf16.mxu0 0
    %763 = vmatpush1.bf16.msra.mxu0 %v725
    %764 = vmatprep.subr.bf16.mxu0 0
    %765 = vmatpush1.bf16.msra.mxu0 %v726
    %766 = vmatprep.subr.bf16.mxu0 0
    %767 = vmatpush1.bf16.msra.mxu0 %v727
    %768 = vmatprep.subr.bf16.mxu0 0
    %769 = vmatpush1.bf16.msra.mxu0 %v728
    %770 = vmatprep.subr.bf16.mxu0 0
    %771 = vmatpush1.bf16.msra.mxu0 %v729
    %772 = vmatprep.subr.bf16.mxu0 0
    %773 = vmatpush1.bf16.msra.mxu0 %v730
    %774 = vmatprep.subr.bf16.mxu0 0
    %775 = vmatpush1.bf16.msra.mxu0 %v731
    %776 = vmatprep.subr.bf16.mxu0 0
    %777 = vmatpush1.bf16.msra.mxu0 %v732
    %778 = vmatprep.subr.bf16.mxu0 0
    %779 = vmatpush1.bf16.msra.mxu0 %v733
    %780 = vmatprep.subr.bf16.mxu0 0
    %781 = vmatpush1.bf16.msra.mxu0 %v734
    %782 = vmatprep.subr.bf16.mxu0 0
    %783 = vmatpush1.bf16.msra.mxu0 %v735
    %784 = vmatprep.mubr.bf16.mxu0 %v621
    %785 = vmatmul.mubr.bf16.gmra.mrb[0].mxu0 %v620
    %v786 = vpop.f32.mrb[0].mxu0
    %v787 = vadd.f32 %v31, %v786
    %v788 = vpop.f32.mrb[0].mxu0
    %v789 = vpop.f32.mrb[0].mxu0
    %v790 = vadd.f32 %v31, %v789
    %v791 = vpop.f32.mrb[0].mxu0
    %792 = vmatprep.mubr.bf16.mxu0 %v623
    %793 = vmatmul.mubr.bf16.gmra.mrb[0].mxu0 %v622
    %v794 = vpop.f32.mrb[0].mxu0
    %v795 = vadd.f32 %v31, %v794
    %v796 = vpop.f32.mrb[0].mxu0
    %v797 = vpop.f32.mrb[0].mxu0
    %v798 = vadd.f32 %v31, %v797
    %v799 = vpop.f32.mrb[0].mxu0
    %800 = vdwg.mxu0
    %v801 = vadd.f32 %v787, %v387
    %v802 = vadd.f32 %v790, %v388
    %v803 = vadd.f32 %v795, %v389
    %v804 = vadd.f32 %v798, %v390
    %805 = vst.msk [vmem:[#allocation2] sm:$0xff] %vm59, %v801
    %806 = vst.msk [vmem:[#allocation2 + $0x8] sm:$0xff] %vm59, %v802
    %807 = vst.msk [vmem:[#allocation2 + $0x10] sm:$0xff] %vm59, %v803
    %808 = vst.msk [vmem:[#allocation2 + $0x18] sm:$0xff] %vm59, %v804
    // Predicated region
    $region30: #{tpu_custom_call.1} parent=1 // pred_check
      _
    $region31: #{tpu_custom_call.1} parent=1 // pred_check_branch
      %810 = sbr.rel (0) target = $region33
    $region32: #{tpu_custom_call.1} parent=1 // pred_region
      %s812 = ssub.s32 512, 512
      %813 = vsyncadd [#allocation3], %s812
      %s814 = sshll.u32 [#allocation2], 4
      %s815 = int_to_ptr.vmem [resolvable:$true] %s814
      %820 = dma.vmem_to_hbm [thread:$0]  %s815, 512, %s7, [#allocation3], 128, 128, 8
    $region33: #{tpu_custom_call.1} parent=1 // pred_fallthru
      _
    // Predicated region
    $region34: #{tpu_custom_call.1} parent=1 // pred_check
      _
    $region35: #{tpu_custom_call.1} parent=1 // pred_check_branch
      %822 = sbr.rel (0) target = $region37
    $region36: #{tpu_custom_call.1} parent=1 // pred_region
      %823 = dma.done [#allocation3], 512
    $region37: #{tpu_custom_call.1} parent=1 // pred_fallthru
      _
    %824 = vsyncpa [#allocation3], 1

</llo_original>
